<compile_context>
chip_gen: v6e
topology: v6e:2x2x1
jax: 0.10.0
libtpu: 0.0.40
codegen_flags: <defaults>
</compile_context>

<pallas_src>
import math
from functools import partial

import jax
import jax.numpy as jnp
from jax import lax
from jax.experimental import pallas as pl
from jax.experimental.pallas import tpu as pltpu

_VMEM_LIMIT_BYTES = 48 * 1024 * 1024  # < 64 MiB physical on v7x, > scoped defaults


def _gelu_exact(x):
    # nn.GELU() default: exact erf-based GELU (computed in f32 accumulator).
    return 0.5 * x * (1.0 + lax.erf(x * (1.0 / math.sqrt(2.0))))


def _round_up(x, m):
    return ((x + m - 1) // m) * m


def _pick_tile(dim, candidates=(512, 256, 128)):
    for c in candidates:
        if dim % c == 0:
            return c
    return dim  # fall back to the whole (small / irregular) dimension


# ---------------------------------------------------------------------------
# Kernel 1: y = act(x @ w + b), K-tiled with f32 VMEM accumulator.
# ---------------------------------------------------------------------------
def _linear_kernel(x_ref, w_ref, b_ref, o_ref, acc_ref, *, activation):
    k = pl.program_id(2)

    @pl.when(k == 0)
    def _init():
        acc_ref[...] = jnp.zeros_like(acc_ref)

    # Native-dtype operands straight into the MXU; accumulate in f32.
    acc_ref[...] += jnp.dot(x_ref[...], w_ref[...],
                            preferred_element_type=jnp.float32)

    @pl.when(k == pl.num_programs(2) - 1)
    def _finalize():
        out = acc_ref[...] + b_ref[...].astype(jnp.float32)
        if activation == "gelu":
            out = _gelu_exact(out)
        o_ref[...] = out.astype(o_ref.dtype)


def linear_pallas(x2d, w, b, *, activation=None, tm=256):
    """x2d: (M, K), w: (K, N) (transposed vs nn.Linear), b: (N,)."""
    m, k_dim = x2d.shape
    k_dim2, n = w.shape
    assert k_dim == k_dim2 and b.shape == (n,)

    tm = min(tm, _round_up(m, 8))
    tk = _pick_tile(k_dim)          # must divide K (reduction axis)
    tn = _pick_tile(n)              # lane-dense output tile

    grid = (pl.cdiv(m, tm), pl.cdiv(n, tn), k_dim // tk)
    b2d = b.reshape(1, n)

    return pl.pallas_call(
        partial(_linear_kernel, activation=activation),
        out_shape=jax.ShapeDtypeStruct((m, n), x2d.dtype),
        grid_spec=pltpu.PrefetchScalarGridSpec(
            num_scalar_prefetch=0,
            grid=grid,
            in_specs=[
                pl.BlockSpec((tm, tk), lambda i, j, k: (i, k)),
                pl.BlockSpec((tk, tn), lambda i, j, k: (k, j)),
                pl.BlockSpec((1, tn), lambda i, j, k: (0, j)),
            ],
            out_specs=pl.BlockSpec((tm, tn), lambda i, j, k: (i, j)),
            scratch_shapes=[pltpu.VMEM((tm, tn), jnp.float32)],
        ),
        compiler_params=pltpu.CompilerParams(
            dimension_semantics=("parallel", "parallel", "arbitrary"),
            vmem_limit_bytes=_VMEM_LIMIT_BYTES,
        ),
    )(x2d, w, b2d)


# ---------------------------------------------------------------------------
# Kernel 2: out = L2normalize(x, dim=-1) @ w_n   (w_n already row-normalized,
# weight_g == 1, no bias).  K (= bottleneck) stays whole inside the block.
# ---------------------------------------------------------------------------
def _l2norm_matmul_kernel(x_ref, w_ref, o_ref):
    x = x_ref[...].astype(jnp.float32)
    norm = jnp.sqrt(jnp.sum(x * x, axis=-1, keepdims=True))
    xn = x * (1.0 / jnp.maximum(norm, 1e-12))       # F.normalize eps
    out = jnp.dot(xn.astype(w_ref.dtype), w_ref[...],
                  preferred_element_type=jnp.float32)
    o_ref[...] = out.astype(o_ref.dtype)


def l2norm_weightnorm_linear_pallas(x2d, w_n, *, tm=256):
    """x2d: (M, Kb), w_n: (Kb, out_dim) with unit-L2 columns."""
    m, k_dim = x2d.shape
    k_dim2, n = w_n.shape
    assert k_dim == k_dim2

    tm = min(tm, _round_up(m, 8))
    tn = _pick_tile(n)
    grid = (pl.cdiv(m, tm), pl.cdiv(n, tn))

    return pl.pallas_call(
        _l2norm_matmul_kernel,
        out_shape=jax.ShapeDtypeStruct((m, n), x2d.dtype),
        grid_spec=pltpu.PrefetchScalarGridSpec(
            num_scalar_prefetch=0,
            grid=grid,
            in_specs=[
                pl.BlockSpec((tm, k_dim), lambda i, j: (i, 0)),
                pl.BlockSpec((k_dim, tn), lambda i, j: (0, j)),
            ],
            out_specs=pl.BlockSpec((tm, tn), lambda i, j: (i, j)),
        ),
        compiler_params=pltpu.CompilerParams(
            dimension_semantics=("parallel", "parallel"),
            vmem_limit_bytes=_VMEM_LIMIT_BYTES,
        ),
    )(x2d, w_n)


# ---------------------------------------------------------------------------
# DINOHead branch / forward.
# ---------------------------------------------------------------------------
def _weight_norm_t(v_t):
    # v_t: (bottleneck, out_dim) = PyTorch v transposed; weight_g == 1 =>
    # each output column gets unit L2 norm over the bottleneck axis.
    return v_t / jnp.sqrt(jnp.sum(v_t * v_t, axis=0, keepdims=True))


def dino_head_branch(x, head_params):
    """MLP (Linear+GELU ... Linear) -> L2 normalize -> weight-norm Linear."""
    orig_shape = x.shape
    h = x.reshape(-1, orig_shape[-1])
    m = h.shape[0]

    mlp = head_params["mlp"]        # list of (w(in,out), b(out,))
    for idx, (w, b) in enumerate(mlp):
        act = "gelu" if idx < len(mlp) - 1 else None
        h = linear_pallas(h, w, b, activation=act)

    w_n = _weight_norm_t(head_params["last_v_t"]).astype(h.dtype)
    out = l2norm_weightnorm_linear_pallas(h, w_n)
    out = out[:m]
    return out.reshape(orig_shape[:-1] + (out.shape[-1],))


_HEAD_NAMES = ("cls", "pt1", "pt2", "pt3")


def dino_head_forward(xs, params, part_index=None):
    if part_index is None:
        return tuple(dino_head_branch(xs[i], params[_HEAD_NAMES[i]])
                     for i in range(4))
    cls = dino_head_branch(xs[0], params["cls"])
    pt = dino_head_branch(xs[1], params[_HEAD_NAMES[part_index + 1]])
    return (cls, pt)


# ---------------------------------------------------------------------------
# Pure-JAX reference for validation.
# ---------------------------------------------------------------------------
def dino_head_branch_ref(x, head_params):
    h = x.reshape(-1, x.shape[-1]).astype(jnp.float32)
    mlp = head_params["mlp"]
    for idx, (w, b) in enumerate(mlp):
        h = h @ w.astype(jnp.float32) + b.astype(jnp.float32)
        if idx < len(mlp) - 1:
            h = _gelu_exact(h)
    norm = jnp.sqrt(jnp.sum(h * h, axis=-1, keepdims=True))
    h = h * (1.0 / jnp.maximum(norm, 1e-12))
    w_n = _weight_norm_t(head_params["last_v_t"].astype(jnp.float32))
    out = h @ w_n
    return out.reshape(x.shape[:-1] + (out.shape[-1],)).astype(x.dtype)


# ---------------------------------------------------------------------------
if __name__ == "__main__":
    # Small shapes consistent with DINOHead (real: in=768, hidden=2048,
    # bottleneck=256, out=65536); kept lane-dense (multiples of 128).
    in_dim, hidden_dim, bottleneck_dim, out_dim = 128, 256, 128, 512
    nlayers = 3
    rows = 8                      # rows per branch (batch of pooled features)

    key = jax.random.PRNGKey(0)
    key_p, key_x = jax.random.split(key)

    def make_head_params(hkey):
        dims = [in_dim] + [hidden_dim] * (nlayers - 1) + [bottleneck_dim]
        keys = jax.random.split(hkey, 2 * nlayers + 1)
        mlp = []
        for li in range(nlayers):
            w = 0.02 * jax.random.normal(keys[2 * li], (dims[li], dims[li + 1]),
                                         dtype=jnp.float32)
            b = 0.02 * jax.random.normal(keys[2 * li + 1], (dims[li + 1],),
                                         dtype=jnp.float32)
            mlp.append((w, b))
        v_t = 0.02 * jax.random.normal(keys[-1], (bottleneck_dim, out_dim),
                                       dtype=jnp.float32)
        return {"mlp": mlp, "last_v_t": v_t}

    params = {}
    for name, hk in zip(_HEAD_NAMES, jax.random.split(key_p, 4)):
        params[name] = make_head_params(hk)

    xs = [jax.random.normal(k, (rows, in_dim), dtype=jnp.float32)
          for k in jax.random.split(key_x, 4)]

    # Path 1: part_index=None -> (cls, pt1, pt2, pt3)
    outs = dino_head_forward(xs, params, part_index=None)
    outs = jax.block_until_ready(outs)
    assert len(outs) == 4
    for o, x_in, name in zip(outs, xs, _HEAD_NAMES):
        ref = dino_head_branch_ref(x_in, params[name])
        assert o.shape == (rows, out_dim)
        assert jnp.allclose(o, ref, atol=1e-4, rtol=1e-4), f"mismatch in {name}"

    # Path 2: part_index=1 -> (cls, pt2)
    outs2 = dino_head_forward([xs[0], xs[1]], params, part_index=1)
    outs2 = jax.block_until_ready(outs2)
    ref_cls = dino_head_branch_ref(xs[0], params["cls"])
    ref_pt2 = dino_head_branch_ref(xs[1], params["pt2"])
    assert jnp.allclose(outs2[0], ref_cls, atol=1e-4, rtol=1e-4)
    assert jnp.allclose(outs2[1], ref_pt2, atol=1e-4, rtol=1e-4)

    print("KERNEL_OK")
</pallas_src>

<mosaic_0001>
module attributes {stable_mosaic.version = 11 : i64} {
  func.func @_linear_kernel(%arg0: i32, %arg1: i32, %arg2: i32, %arg3: memref<8x128xf32, #tpu.memory_space<vmem>>, %arg4: memref<128x256xf32, #tpu.memory_space<vmem>>, %arg5: memref<1x256xf32, #tpu.memory_space<vmem>>, %arg6: memref<8x256xf32, #tpu.memory_space<vmem>>, %arg7: memref<8x256xf32, #tpu.memory_space<vmem>>) attributes {dimension_semantics = [#tpu.dimension_semantics<parallel>, #tpu.dimension_semantics<parallel>, #tpu.dimension_semantics<arbitrary>], iteration_bounds = array<i64: 1, 1, 1>, scalar_prefetch = 0 : i64, scratch_operands = 1 : i64, tpu.core_type = #tpu.core_type<tc>, window_params = [{transform_indices = @transform_0, window_bounds = array<i64: 8, 128>}, {transform_indices = @transform_1, window_bounds = array<i64: 128, 256>}, {transform_indices = @transform_2, window_bounds = array<i64: 1, 256>}, {transform_indices = @transform_3, window_bounds = array<i64: 8, 256>}]} {
    %c0_i32 = arith.constant 0 : i32
    %0 = arith.cmpi eq, %arg2, %c0_i32 : i32
    %1 = arith.extui %0 : i1 to i32
    %c0_i32_0 = arith.constant 0 : i32
    %2 = arith.cmpi ne, %1, %c0_i32_0 : i32
    scf.if %2 {
      %cst_10 = arith.constant 0.000000e+00 : f32
      %12 = vector.broadcast %cst_10 : f32 to vector<8x256xf32>
      %c0_11 = arith.constant 0 : index
      %c0_12 = arith.constant 0 : index
      %13 = vector.load %arg7[%c0_11, %c0_12] : memref<8x256xf32, #tpu.memory_space<vmem>>, vector<8x256xf32>
      tpu.vector_store %arg7[%c0_11, %c0_12], %12 {strides = array<i32>} : memref<8x256xf32, #tpu.memory_space<vmem>>, vector<8x256xf32>,
    } else {
    }
    %c0 = arith.constant 0 : index
    %c0_1 = arith.constant 0 : index
    %3 = vector.load %arg7[%c0, %c0_1] : memref<8x256xf32, #tpu.memory_space<vmem>>, vector<8x256xf32>
    %c0_2 = arith.constant 0 : index
    %c0_3 = arith.constant 0 : index
    %4 = vector.load %arg3[%c0_2, %c0_3] : memref<8x128xf32, #tpu.memory_space<vmem>>, vector<8x128xf32>
    %c0_4 = arith.constant 0 : index
    %c0_5 = arith.constant 0 : index
    %5 = vector.load %arg4[%c0_4, %c0_5] : memref<128x256xf32, #tpu.memory_space<vmem>>, vector<128x256xf32>
    %cst = arith.constant dense<0.000000e+00> : vector<8x256xf32>
    %6 = tpu.matmul %4, %5, %cst {dimension_numbers = #tpu.dot_dimension_numbers<[1], [0], [0], [1], [0, 0, 1, 1], [], []>} : vector<8x128xf32>, vector<128x256xf32>, vector<8x256xf32> -> vector<8x256xf32>
    %7 = arith.addf %3, %6 : vector<8x256xf32>
    %c0_6 = arith.constant 0 : index
    %c0_7 = arith.constant 0 : index
    %8 = vector.load %arg7[%c0_6, %c0_7] : memref<8x256xf32, #tpu.memory_space<vmem>>, vector<8x256xf32>
    tpu.vector_store %arg7[%c0_6, %c0_7], %7 {strides = array<i32>} : memref<8x256xf32, #tpu.memory_space<vmem>>, vector<8x256xf32>,
    %c0_i32_8 = arith.constant 0 : i32
    %9 = arith.cmpi eq, %arg2, %c0_i32_8 : i32
    %10 = arith.extui %9 : i1 to i32
    %c0_i32_9 = arith.constant 0 : i32
    %11 = arith.cmpi ne, %10, %c0_i32_9 : i32
    scf.if %11 {
      %c0_10 = arith.constant 0 : index
      %c0_11 = arith.constant 0 : index
      %12 = vector.load %arg7[%c0_10, %c0_11] : memref<8x256xf32, #tpu.memory_space<vmem>>, vector<8x256xf32>
      %c0_12 = arith.constant 0 : index
      %c0_13 = arith.constant 0 : index
      %13 = vector.load %arg5[%c0_12, %c0_13] : memref<1x256xf32, #tpu.memory_space<vmem>>, vector<1x256xf32>
      %14 = vector.broadcast %13 : vector<1x256xf32> to vector<8x256xf32>
      %15 = arith.addf %12, %14 : vector<8x256xf32>
      %cst_14 = arith.constant 5.000000e-01 : f32
      %16 = vector.broadcast %cst_14 : f32 to vector<8x256xf32>
      %17 = arith.mulf %16, %15 : vector<8x256xf32>
      %cst_15 = arith.constant 0.707106769 : f32
      %18 = vector.broadcast %cst_15 : f32 to vector<8x256xf32>
      %19 = arith.mulf %15, %18 : vector<8x256xf32>
      %20 = math.erf %19 : vector<8x256xf32>
      %cst_16 = arith.constant 1.000000e+00 : f32
      %21 = vector.broadcast %cst_16 : f32 to vector<8x256xf32>
      %22 = arith.addf %21, %20 : vector<8x256xf32>
      %23 = arith.mulf %17, %22 : vector<8x256xf32>
      %c0_17 = arith.constant 0 : index
      %c0_18 = arith.constant 0 : index
      %24 = vector.load %arg6[%c0_17, %c0_18] : memref<8x256xf32, #tpu.memory_space<vmem>>, vector<8x256xf32>
      tpu.vector_store %arg6[%c0_17, %c0_18], %23 {strides = array<i32>} : memref<8x256xf32, #tpu.memory_space<vmem>>, vector<8x256xf32>,
    } else {
    }
    return
  }
  func.func @transform_0(%arg0: i32, %arg1: i32, %arg2: i32) -> (i32, i32) {
    %c0_i32 = arith.constant 0 : i32
    return %arg0, %arg2 : i32, i32
  }
  func.func @transform_1(%arg0: i32, %arg1: i32, %arg2: i32) -> (i32, i32) {
    %c0_i32 = arith.constant 0 : i32
    return %arg2, %arg1 : i32, i32
  }
  func.func @transform_2(%arg0: i32, %arg1: i32, %arg2: i32) -> (i32, i32) {
    %c0_i32 = arith.constant 0 : i32
    %c0_i32_0 = arith.constant 0 : i32
    return %c0_i32, %arg1 : i32, i32
  }
  func.func @transform_3(%arg0: i32, %arg1: i32, %arg2: i32) -> (i32, i32) {
    %c0_i32 = arith.constant 0 : i32
    return %arg0, %arg1 : i32, i32
  }
}

</mosaic_0001>

<llo_original>
// kernel: tpu_custom_call.1
$region0: #{tpu_custom_call.1}
  #allocation0 [shape = 'u32[]', space=smem, size = 0x4, offset = 0x4, fixed_abs, tag = 'smem constant byte address 0x4 - core index']
  #allocation1 [shape = 'u32[144,128]{1,0:T(1,128)}', space=vmem, size = 0x12000, scoped, tag = 'internal scratch']
  #allocation2 [shape = 'f32[8,256]{1,0:T(8,128)}', space=vmem, size = 0x2000, scoped, tag = 'scratch operand']
  %s0 = inlined_call_operand.hbm [shape: f32[8,128], index: 0, kind: input, shape index: {}]
  %s1 = inlined_call_operand.hbm [shape: f32[128,256], index: 1, kind: input, shape index: {}]
  %s2 = inlined_call_operand.vmem [shape: f32[1,256], index: 2, kind: input, shape index: {}]
  %s3 = inlined_call_operand.hbm [shape: f32[8,256], index: 3, kind: output, shape index: {}]
  %s4 = sld [smem:[#allocation0]]
  $region38: #{tpu_custom_call.1} parent=0
    _
  %s6 = ssub.s32 1, %s4
  %s7 = scalar_select 0, %s6, %s4
  $region1: #{tpu_custom_call.1} parent=0
    #allocation3 [shape = 'u8[4096]{0}', space=vmem, size = 0x1000, scoped, tag = 'input window, operand 0, single buffered']
    #allocation4 [shape = 's32[1]{0}', space=sflag, size = 0x4, scoped, tag = 'scoped memory for tpu_custom_call.1']
    #allocation5 [shape = 's32[1]{0}', space=sflag, size = 0x4, scoped, tag = 'scoped memory for tpu_custom_call.1']
    #allocation6 [shape = 'u8[131072]{0}', space=vmem, size = 0x20000, scoped, tag = 'input window, operand 1, single buffered']
    #allocation7 [shape = 's32[1]{0}', space=sflag, size = 0x4, scoped, tag = 'scoped memory for tpu_custom_call.1']
    #allocation8 [shape = 'u8[8192]{0}', space=vmem, size = 0x2000, scoped, tag = 'output window, operand 0, single buffered']
    %8 = vsyncpa [#allocation4], 0
    %9 = vsyncpa [#allocation7], 0
    %10 = vsyncpa [#allocation5], 0
    // Predicated region
    $region2: #{tpu_custom_call.1} parent=1 // pred_check
      _
    $region3: #{tpu_custom_call.1} parent=1 // pred_check_branch
      %12 = sbr.rel (0) target = $region5
    $region4: #{tpu_custom_call.1} parent=1 // pred_region
      %s14 = ssub.s32 128, 128
      %15 = vsyncadd [#allocation4], %s14
      %s17 = sshll.u32 [#allocation3], 4
      %s18 = int_to_ptr.vmem [resolvable:$true] %s17
      %20 = dma.hbm_to_vmem [thread:$0]  %s0, 128, %s18, [#allocation4]
    $region5: #{tpu_custom_call.1} parent=1 // pred_fallthru
      _
    // Predicated region
    $region6: #{tpu_custom_call.1} parent=1 // pred_check
      _
    $region7: #{tpu_custom_call.1} parent=1 // pred_check_branch
      %22 = sbr.rel (0) target = $region9
    $region8: #{tpu_custom_call.1} parent=1 // pred_region
      %s24 = ssub.s32 4096, 4096
      %25 = vsyncadd [#allocation7], %s24
      %s26 = sshll.u32 [#allocation6], 4
      %s27 = int_to_ptr.vmem [resolvable:$true] %s26
      %32 = dma.hbm_to_vmem [thread:$0]  %s1, 4096, %s27, [#allocation7], 256, 256, 16
    $region9: #{tpu_custom_call.1} parent=1 // pred_fallthru
      _
    // Predicated region
    $region10: #{tpu_custom_call.1} parent=1 // pred_check
      _
    $region11: #{tpu_custom_call.1} parent=1 // pred_check_branch
      %34 = sbr.rel (0) target = $region13
    $region12: #{tpu_custom_call.1} parent=1 // pred_region
      _
    $region13: #{tpu_custom_call.1} parent=1 // pred_fallthru
      _
    // Predicated region
    $region14: #{tpu_custom_call.1} parent=1 // pred_check
      _
    $region15: #{tpu_custom_call.1} parent=1 // pred_check_branch
      %36 = sbr.rel (0) target = $region17
    $region16: #{tpu_custom_call.1} parent=1 // pred_region
      %37 = dma.done [#allocation4], 128
    $region17: #{tpu_custom_call.1} parent=1 // pred_fallthru
      _
    // Predicated region
    $region18: #{tpu_custom_call.1} parent=1 // pred_check
      _
    $region19: #{tpu_custom_call.1} parent=1 // pred_check_branch
      %39 = sbr.rel (0) target = $region21
    $region20: #{tpu_custom_call.1} parent=1 // pred_region
      %40 = dma.done [#allocation7], 4096
    $region21: #{tpu_custom_call.1} parent=1 // pred_fallthru
      _
    %p41 = scmp.eq.s32.totalorder 0, 0
    // Predicated region
    $region22: #{tpu_custom_call.1} parent=1 // pred_check
      %p42 = pneg %p41
    $region23: #{tpu_custom_call.1} parent=1 // pred_check_branch
      %44 = sbr.rel (%p42) target = $region25
    $region24: #{tpu_custom_call.1} parent=1 // pred_region
      %45 = vst [vmem:[#allocation2] sm:$0xff] 0.0
      %46 = vst [vmem:[#allocation2 + $0x8] sm:$0xff] 0.0
    $region25: #{tpu_custom_call.1} parent=1 // pred_fallthru
      _
    %v47 = vld [vmem:[#allocation2] sm:$0xff]
    %v48 = vld [vmem:[#allocation2 + $0x8] sm:$0xff]
    %v49 = vld [vmem:[#allocation3] sm:$0xff]
    %v50 = vld [vmem:[#allocation6] sm:$0xff]
    %v51 = vld [vmem:[#allocation6 + $0x8] sm:$0xff]
    %v52 = vld [vmem:[#allocation6 + $0x10] sm:$0xff]
    %v53 = vld [vmem:[#allocation6 + $0x18] sm:$0xff]
    %v54 = vld [vmem:[#allocation6 + $0x20] sm:$0xff]
    %v55 = vld [vmem:[#allocation6 + $0x28] sm:$0xff]
    %v56 = vld [vmem:[#allocation6 + $0x30] sm:$0xff]
    %v57 = vld [vmem:[#allocation6 + $0x38] sm:$0xff]
    %v58 = vld [vmem:[#allocation6 + $0x40] sm:$0xff]
    %v59 = vld [vmem:[#allocation6 + $0x48] sm:$0xff]
    %v60 = vld [vmem:[#allocation6 + $0x50] sm:$0xff]
    %v61 = vld [vmem:[#allocation6 + $0x58] sm:$0xff]
    %v62 = vld [vmem:[#allocation6 + $0x60] sm:$0xff]
    %v63 = vld [vmem:[#allocation6 + $0x68] sm:$0xff]
    %v64 = vld [vmem:[#allocation6 + $0x70] sm:$0xff]
    %v65 = vld [vmem:[#allocation6 + $0x78] sm:$0xff]
    %v66 = vld [vmem:[#allocation6 + $0x80] sm:$0xff]
    %v67 = vld [vmem:[#allocation6 + $0x88] sm:$0xff]
    %v68 = vld [vmem:[#allocation6 + $0x90] sm:$0xff]
    %v69 = vld [vmem:[#allocation6 + $0x98] sm:$0xff]
    %v70 = vld [vmem:[#allocation6 + $0xa0] sm:$0xff]
    %v71 = vld [vmem:[#allocation6 + $0xa8] sm:$0xff]
    %v72 = vld [vmem:[#allocation6 + $0xb0] sm:$0xff]
    %v73 = vld [vmem:[#allocation6 + $0xb8] sm:$0xff]
    %v74 = vld [vmem:[#allocation6 + $0xc0] sm:$0xff]
    %v75 = vld [vmem:[#allocation6 + $0xc8] sm:$0xff]
    %v76 = vld [vmem:[#allocation6 + $0xd0] sm:$0xff]
    %v77 = vld [vmem:[#allocation6 + $0xd8] sm:$0xff]
    %v78 = vld [vmem:[#allocation6 + $0xe0] sm:$0xff]
    %v79 = vld [vmem:[#allocation6 + $0xe8] sm:$0xff]
    %v80 = vld [vmem:[#allocation6 + $0xf0] sm:$0xff]
    %v81 = vld [vmem:[#allocation6 + $0xf8] sm:$0xff]
    %82 = vmatprep.subr.mxu0 %v81
    %83 = vmatpush1.msra.mxu0 %v80
    %84 = vmatprep.subr.mxu0 %v79
    %85 = vmatpush1.msra.mxu0 %v78
    %86 = vmatprep.subr.mxu0 %v77
    %87 = vmatpush1.msra.mxu0 %v76
    %88 = vmatprep.subr.mxu0 %v75
    %89 = vmatpush1.msra.mxu0 %v74
    %90 = vmatprep.subr.mxu0 %v73
    %91 = vmatpush1.msra.mxu0 %v72
    %92 = vmatprep.subr.mxu0 %v71
    %93 = vmatpush1.msra.mxu0 %v70
    %94 = vmatprep.subr.mxu0 %v69
    %95 = vmatpush1.msra.mxu0 %v68
    %96 = vmatprep.subr.mxu0 %v67
    %97 = vmatpush1.msra.mxu0 %v66
    %98 = vmatprep.subr.mxu0 %v65
    %99 = vmatpush1.msra.mxu0 %v64
    %100 = vmatprep.subr.mxu0 %v63
    %101 = vmatpush1.msra.mxu0 %v62
    %102 = vmatprep.subr.mxu0 %v61
    %103 = vmatpush1.msra.mxu0 %v60
    %104 = vmatprep.subr.mxu0 %v59
    %105 = vmatpush1.msra.mxu0 %v58
    %106 = vmatprep.subr.mxu0 %v57
    %107 = vmatpush1.msra.mxu0 %v56
    %108 = vmatprep.subr.mxu0 %v55
    %109 = vmatpush1.msra.mxu0 %v54
    %110 = vmatprep.subr.mxu0 %v53
    %111 = vmatpush1.msra.mxu0 %v52
    %112 = vmatprep.subr.mxu0 %v51
    %113 = vmatpush1.msra.mxu0 %v50
    %114 = vmatprep.subr.mxu0 0.0
    %115 = vmatpush2.msra.mxu0 0.0
    %116 = vmatprep.subr.mxu0 0.0
    %117 = vmatpush2.msra.mxu0 0.0
    %118 = vmatprep.subr.mxu0 0.0
    %119 = vmatpush2.msra.mxu0 0.0
    %120 = vmatprep.subr.mxu0 0.0
    %121 = vmatpush2.msra.mxu0 0.0
    %122 = vmatprep.subr.mxu0 0.0
    %123 = vmatpush2.msra.mxu0 0.0
    %124 = vmatprep.subr.mxu0 0.0
    %125 = vmatpush2.msra.mxu0 0.0
    %126 = vmatprep.subr.mxu0 0.0
    %127 = vmatpush2.msra.mxu0 0.0
    %128 = vmatprep.subr.mxu0 0.0
    %129 = vmatpush2.msra.mxu0 0.0
    %130 = vmatprep.subr.mxu0 0.0
    %131 = vmatpush2.msra.mxu0 0.0
    %132 = vmatprep.subr.mxu0 0.0
    %133 = vmatpush2.msra.mxu0 0.0
    %134 = vmatprep.subr.mxu0 0.0
    %135 = vmatpush2.msra.mxu0 0.0
    %136 = vmatprep.subr.mxu0 0.0
    %137 = vmatpush2.msra.mxu0 0.0
    %138 = vmatprep.subr.mxu0 0.0
    %139 = vmatpush2.msra.mxu0 0.0
    %140 = vmatprep.subr.mxu0 0.0
    %141 = vmatpush2.msra.mxu0 0.0
    %142 = vmatprep.subr.mxu0 0.0
    %143 = vmatpush2.msra.mxu0 0.0
    %144 = vmatprep.subr.mxu0 0.0
    %145 = vmatpush2.msra.mxu0 0.0
    %146 = vmatprep.mubr.f32.mxu0 0.0
    %147 = vmatmul.mubr.f32.gmra.mxu0 %v49
    %v148 = vpop.f32.mrf.mxu0
    %v149 = vadd.f32 0.0, %v148
    %v150 = vpop.f32.mrf.mxu0
    %v151 = vadd.f32 0.0, %v150
    %152 = vdwg.mxu0
    %v153 = vadd.f32 %v47, %v149
    %v154 = vadd.f32 %v48, %v151
    %155 = vst [vmem:[#allocation2] sm:$0xff] %v153
    %156 = vst [vmem:[#allocation2 + $0x8] sm:$0xff] %v154
    // Predicated region
    $region26: #{tpu_custom_call.1} parent=1 // pred_check
      %p157 = pneg %p41
    $region27: #{tpu_custom_call.1} parent=1 // pred_check_branch
      %159 = sbr.rel (%p157) target = $region29
    $region28: #{tpu_custom_call.1} parent=1 // pred_region
      %v160 = vld [vmem:[#allocation2] sm:$0xff]
      %v161 = vld [vmem:[#allocation2 + $0x8] sm:$0xff]
      %v162 = vld [vmem:[%s2] sm:$0x3]
      %v164 = vlaneseq
      %v165 = vshrl.u32 %v164, 7
      %v166 = vsub.s32 0, %v165
      %v167 = vrot.slane %v162, %v166
      %v168 = vlaneseq
      %v169 = vshrl.u32 %v168, 7
      %v170 = vsub.s32 1, %v169
      %v171 = vrot.slane %v162, %v170
      %v174 = vadd.f32 %v160, %v167
      %v175 = vadd.f32 %v161, %v171
      %v176 = vmul.f32 %v174, 0.5
      %v177 = vmul.f32 %v175, 0.5
      %v178 = vmul.f32 %v174, 0.70710677
      %v179 = vmul.f32 %v175, 0.70710677
      %v180 = verf.f32.pop %v178
      %v181 = verf.f32.pop %v179
      %v182 = vadd.f32 %v180, 1.0
      %v183 = vadd.f32 %v181, 1.0
      %v184 = vmul.f32 %v176, %v182
      %v185 = vmul.f32 %v177, %v183
      %186 = vst [vmem:[#allocation8] sm:$0xff] %v184
      %187 = vst [vmem:[#allocation8 + $0x8] sm:$0xff] %v185
    $region29: #{tpu_custom_call.1} parent=1 // pred_fallthru
      _
    // Predicated region
    $region30: #{tpu_custom_call.1} parent=1 // pred_check
      _
    $region31: #{tpu_custom_call.1} parent=1 // pred_check_branch
      %189 = sbr.rel (0) target = $region33
    $region32: #{tpu_custom_call.1} parent=1 // pred_region
      %s191 = ssub.s32 256, 256
      %192 = vsyncadd [#allocation5], %s191
      %s194 = sshll.u32 [#allocation8], 4
      %s195 = int_to_ptr.vmem [resolvable:$true] %s194
      %197 = dma.vmem_to_hbm [thread:$0]  %s195, 256, %s3, [#allocation5]
    $region33: #{tpu_custom_call.1} parent=1 // pred_fallthru
      _
    // Predicated region
    $region34: #{tpu_custom_call.1} parent=1 // pred_check
      _
    $region35: #{tpu_custom_call.1} parent=1 // pred_check_branch
      %199 = sbr.rel (0) target = $region37
    $region36: #{tpu_custom_call.1} parent=1 // pred_region
      %200 = dma.done [#allocation5], 256
    $region37: #{tpu_custom_call.1} parent=1 // pred_fallthru
      _
    %201 = vsyncpa [#allocation4], 1
    %202 = vsyncpa [#allocation7], 1
    %203 = vsyncpa [#allocation5], 1

</llo_original>
